<compile_context>
chip_gen: v5e
topology: v5e:2x2
jax: 0.10.0
libtpu: 0.0.40
codegen_flags: <defaults>
</compile_context>

<pallas_src>
import functools

import jax
import jax.numpy as jnp
from jax.experimental import pallas as pl
from jax.experimental.pallas import tpu as pltpu


LANE = 128          # lane (last-dim) tiling unit
SUBLANE_BF16 = 16   # bf16 sublane packing: one vreg holds [16, 128]


def _round_up(n, m):
    return ((n + m - 1) // m) * m


def _mlp_kernel(n_layers, out_dim, out_pad, apply_softmax, *refs):
    """Fused padded MLP forward.

    refs = (x_ref, w0, b0, w1, b1, ..., o_ref)
      x_ref : (TM, in_pad)            bf16
      wi    : (in_pad_i, out_pad_i)   bf16  (pre-transposed to (in, out))
      bi    : (1, out_pad_i)          f32
      o_ref : (TM, out_pad)           f32
    """
    x_ref = refs[0]
    o_ref = refs[-1]
    params = refs[1:-1]

    h = x_ref[...]                                          # bf16, MXU-ready
    for i in range(n_layers):
        w = params[2 * i][...]                              # bf16 (in, out), no transpose
        b = params[2 * i + 1][...]                          # f32  (1, out)
        # y = x @ W on the MXU (f32 accumulation), bias-add in f32 on the VPU.
        h = jnp.dot(h, w, preferred_element_type=jnp.float32) + b
        if i < n_layers - 1:
            h = jnp.maximum(h, 0.0).astype(jnp.bfloat16)    # ReLU, back to bf16 for next MXU pass

    if apply_softmax:
        if out_dim < out_pad:
            # Padded logit lanes (zero weight cols / zero bias) must not pollute the
            # softmax max / denominator -> mask them to -inf (exp(-inf) == 0).
            col = jax.lax.broadcasted_iota(jnp.int32, h.shape, 1)
            h = jnp.where(col < out_dim, h, -jnp.inf)
        m = jnp.max(h, axis=-1, keepdims=True)              # XLU reduce
        e = jnp.exp(h - m)                                  # EUP
        denom = jnp.sum(e, axis=-1, keepdims=True)          # XLU reduce
        h = e * pl.reciprocal(denom, approx=True)           # EUP vrcp, off the VALU path

    o_ref[...] = h.astype(o_ref.dtype)                      # unmasked lane-dense store


@functools.partial(jax.jit, static_argnames=("apply_softmax", "block_m"))
def _forward_impl(x, weights, biases, apply_softmax, block_m):
    n_layers = len(weights)
    batch, in_dim = x.shape
    out_dim = weights[-1].shape[0]

    # Layer feature dims (unpadded) and lane-padded versions.
    dims = [in_dim] + [w.shape[0] for w in weights]
    pdims = [_round_up(d, LANE) for d in dims]

    # One-time layout prep: transpose to (in, out), zero-pad to (in_pad, out_pad), bf16 cast.
    params = []
    for i, (w, b) in enumerate(zip(weights, biases)):
        k_p, n_p = pdims[i], pdims[i + 1]
        w_t = jnp.pad(
            w.T.astype(jnp.bfloat16),
            ((0, k_p - w.shape[1]), (0, n_p - w.shape[0])),
        )
        b_p = jnp.pad(b.astype(jnp.float32), (0, n_p - b.shape[0])).reshape(1, n_p)
        params.append(w_t)
        params.append(b_p)

    # Batch (sublane) tiling: multiples of 16 rows for bf16; tile large batches at block_m.
    tm = _round_up(min(block_m, _round_up(batch, SUBLANE_BF16)), SUBLANE_BF16)
    b_pad = _round_up(batch, tm)
    x_p = jnp.pad(
        x.astype(jnp.bfloat16),
        ((0, b_pad - batch), (0, pdims[0] - in_dim)),
    )

    grid = (b_pad // tm,)

    in_specs = [pl.BlockSpec((tm, pdims[0]), lambda i: (i, 0))]       # pipelined activations
    for li in range(n_layers):
        k_p, n_p = pdims[li], pdims[li + 1]
        in_specs.append(pl.BlockSpec((k_p, n_p), lambda i: (0, 0)))   # VMEM-resident weight
        in_specs.append(pl.BlockSpec((1, n_p), lambda i: (0, 0)))     # VMEM-resident bias

    out_spec = pl.BlockSpec((tm, pdims[-1]), lambda i: (i, 0))        # lane-dense output slab

    # VMEM budget: resident weights/biases + double-buffered input/output blocks + slack.
    resident = sum(p.size * p.dtype.itemsize for p in params)
    streamed = 2 * (tm * pdims[0] * 2 + tm * pdims[-1] * 4)
    vmem_limit = int(min(100 * 1024 * 1024,
                         max(32 * 1024 * 1024, 2 * (resident + streamed) + (1 << 20))))

    kernel = functools.partial(_mlp_kernel, n_layers, out_dim, pdims[-1], apply_softmax)
    out_padded = pl.pallas_call(
        kernel,
        out_shape=jax.ShapeDtypeStruct((b_pad, pdims[-1]), jnp.float32),
        grid=grid,
        in_specs=in_specs,
        out_specs=out_spec,
        compiler_params=pltpu.CompilerParams(
            dimension_semantics=("parallel",),   # shard batch blocks across TCs on v7x
            vmem_limit_bytes=vmem_limit,
        ),
    )(x_p, *params)

    return out_padded[:batch, :out_dim].astype(x.dtype)


def surname_classifier_forward(x, weights, biases, apply_softmax=False, block_m=256):
    """Fused MLP forward on TPU. weights follow PyTorch nn.Linear convention (out, in)."""
    return _forward_impl(x, list(weights), list(biases), apply_softmax, block_m)


def init_params(key, input_dim, hidden_dims, out_dim):
    """Deterministic PyTorch-style Linear init: U(-1/sqrt(fan_in), 1/sqrt(fan_in))."""
    layer_dims = [input_dim] + hidden_dims + [out_dim]
    weights, biases = [], []
    for i in range(len(layer_dims) - 1):
        fan_in, fan_out = layer_dims[i], layer_dims[i + 1]
        key, kw, kb = jax.random.split(key, 3)
        bound = 1.0 / jnp.sqrt(fan_in)
        weights.append(
            jax.random.uniform(kw, (fan_out, fan_in), jnp.float32, -bound, bound)
        )
        biases.append(
            jax.random.uniform(kb, (fan_out,), jnp.float32, -bound, bound)
        )
    return weights, biases


def reference_forward(x, weights, biases, apply_softmax=False, compute_dtype=jnp.float32):
    """Pure-JAX reference; compute_dtype=bfloat16 mirrors the kernel's MXU numerics."""
    h = x.astype(compute_dtype)
    n = len(weights)
    for i, (w, b) in enumerate(zip(weights, biases)):
        h = jnp.dot(h.astype(compute_dtype), w.T.astype(compute_dtype),
                    preferred_element_type=jnp.float32) + b.astype(jnp.float32)
        if i < n - 1:
            h = jnp.maximum(h, 0.0)
    if apply_softmax:
        h = jax.nn.softmax(h, axis=1)
    return h


if __name__ == "__main__":
    # Small shapes consistent with the module: MLP over surname feature vectors.
    batch = 4
    input_dim = 16
    hidden_dims = [32, 32]
    out_dim = 8

    key = jax.random.PRNGKey(0)
    key, kx = jax.random.split(key)
    x = jax.random.normal(kx, (batch, input_dim), jnp.float32)

    weights, biases = init_params(key, input_dim, hidden_dims, out_dim)

    # logits path
    logits = jax.block_until_ready(
        surname_classifier_forward(x, weights, biases, apply_softmax=False))
    # softmax path
    probs = jax.block_until_ready(
        surname_classifier_forward(x, weights, biases, apply_softmax=True))

    assert logits.shape == (batch, out_dim)
    assert probs.shape == (batch, out_dim)

    # Tight check against a bf16-compute reference (matches kernel numerics).
    ref_logits_bf16 = reference_forward(x, weights, biases, apply_softmax=False,
                                        compute_dtype=jnp.bfloat16)
    assert jnp.allclose(logits, ref_logits_bf16, atol=2e-3, rtol=2e-3)

    # Looser check against the full-f32 reference (bf16 matmul inputs).
    ref_logits_f32 = reference_forward(x, weights, biases, apply_softmax=False)
    ref_probs_f32 = reference_forward(x, weights, biases, apply_softmax=True)
    assert jnp.allclose(logits, ref_logits_f32, atol=1e-1, rtol=1e-1)
    assert jnp.allclose(probs, ref_probs_f32, atol=2e-2, rtol=5e-2)

    # Softmax sanity: rows sum to ~1 and everything is finite.
    assert jnp.allclose(jnp.sum(probs, axis=1), 1.0, atol=5e-3)
    assert bool(jnp.all(jnp.isfinite(logits))) and bool(jnp.all(jnp.isfinite(probs)))

    print("KERNEL_OK")
</pallas_src>

<mosaic_0001>
module attributes {stable_mosaic.version = 11 : i64} {
  func.func @_mlp_kernel(%arg0: i32, %arg1: memref<16x128xbf16, #tpu.memory_space<vmem>>, %arg2: memref<128x128xbf16, #tpu.memory_space<vmem>>, %arg3: memref<1x128xf32, #tpu.memory_space<vmem>>, %arg4: memref<128x128xbf16, #tpu.memory_space<vmem>>, %arg5: memref<1x128xf32, #tpu.memory_space<vmem>>, %arg6: memref<128x128xbf16, #tpu.memory_space<vmem>>, %arg7: memref<1x128xf32, #tpu.memory_space<vmem>>, %arg8: memref<16x128xf32, #tpu.memory_space<vmem>>) attributes {dimension_semantics = [#tpu.dimension_semantics<parallel>], iteration_bounds = array<i64: 1>, scalar_prefetch = 0 : i64, scratch_operands = 0 : i64, tpu.core_type = #tpu.core_type<tc>, window_params = [{transform_indices = @transform_0, window_bounds = array<i64: 16, 128>}, {pipeline_mode = #tpu.pipeline_mode<synchronous>, transform_indices = @transform_1, window_bounds = array<i64: 128, 128>}, {pipeline_mode = #tpu.pipeline_mode<synchronous>, transform_indices = @transform_2, window_bounds = array<i64: 1, 128>}, {pipeline_mode = #tpu.pipeline_mode<synchronous>, transform_indices = @transform_3, window_bounds = array<i64: 128, 128>}, {pipeline_mode = #tpu.pipeline_mode<synchronous>, transform_indices = @transform_4, window_bounds = array<i64: 1, 128>}, {pipeline_mode = #tpu.pipeline_mode<synchronous>, transform_indices = @transform_5, window_bounds = array<i64: 128, 128>}, {pipeline_mode = #tpu.pipeline_mode<synchronous>, transform_indices = @transform_6, window_bounds = array<i64: 1, 128>}, {transform_indices = @transform_7, window_bounds = array<i64: 16, 128>}]} {
    %c0 = arith.constant 0 : index
    %c0_0 = arith.constant 0 : index
    %0 = vector.load %arg1[%c0, %c0_0] : memref<16x128xbf16, #tpu.memory_space<vmem>>, vector<16x128xbf16>
    %c0_1 = arith.constant 0 : index
    %c0_2 = arith.constant 0 : index
    %1 = vector.load %arg2[%c0_1, %c0_2] : memref<128x128xbf16, #tpu.memory_space<vmem>>, vector<128x128xbf16>
    %c0_3 = arith.constant 0 : index
    %c0_4 = arith.constant 0 : index
    %2 = vector.load %arg3[%c0_3, %c0_4] : memref<1x128xf32, #tpu.memory_space<vmem>>, vector<1x128xf32>
    %cst = arith.constant dense<0.000000e+00> : vector<16x128xf32>
    %3 = tpu.matmul %0, %1, %cst {dimension_numbers = #tpu.dot_dimension_numbers<[1], [0], [0], [1], [0, 0, 1, 1], [], []>} : vector<16x128xbf16>, vector<128x128xbf16>, vector<16x128xf32> -> vector<16x128xf32>
    %4 = vector.broadcast %2 : vector<1x128xf32> to vector<16x128xf32>
    %5 = arith.addf %3, %4 : vector<16x128xf32>
    %cst_5 = arith.constant 0.000000e+00 : f32
    %6 = vector.broadcast %cst_5 : f32 to vector<16x128xf32>
    %7 = arith.maximumf %5, %6 : vector<16x128xf32>
    %8 = arith.truncf %7 : vector<16x128xf32> to vector<16x128xbf16>
    %c0_6 = arith.constant 0 : index
    %c0_7 = arith.constant 0 : index
    %9 = vector.load %arg4[%c0_6, %c0_7] : memref<128x128xbf16, #tpu.memory_space<vmem>>, vector<128x128xbf16>
    %c0_8 = arith.constant 0 : index
    %c0_9 = arith.constant 0 : index
    %10 = vector.load %arg5[%c0_8, %c0_9] : memref<1x128xf32, #tpu.memory_space<vmem>>, vector<1x128xf32>
    %cst_10 = arith.constant dense<0.000000e+00> : vector<16x128xf32>
    %11 = tpu.matmul %8, %9, %cst_10 {dimension_numbers = #tpu.dot_dimension_numbers<[1], [0], [0], [1], [0, 0, 1, 1], [], []>} : vector<16x128xbf16>, vector<128x128xbf16>, vector<16x128xf32> -> vector<16x128xf32>
    %12 = vector.broadcast %10 : vector<1x128xf32> to vector<16x128xf32>
    %13 = arith.addf %11, %12 : vector<16x128xf32>
    %cst_11 = arith.constant 0.000000e+00 : f32
    %14 = vector.broadcast %cst_11 : f32 to vector<16x128xf32>
    %15 = arith.maximumf %13, %14 : vector<16x128xf32>
    %16 = arith.truncf %15 : vector<16x128xf32> to vector<16x128xbf16>
    %c0_12 = arith.constant 0 : index
    %c0_13 = arith.constant 0 : index
    %17 = vector.load %arg6[%c0_12, %c0_13] : memref<128x128xbf16, #tpu.memory_space<vmem>>, vector<128x128xbf16>
    %c0_14 = arith.constant 0 : index
    %c0_15 = arith.constant 0 : index
    %18 = vector.load %arg7[%c0_14, %c0_15] : memref<1x128xf32, #tpu.memory_space<vmem>>, vector<1x128xf32>
    %cst_16 = arith.constant dense<0.000000e+00> : vector<16x128xf32>
    %19 = tpu.matmul %16, %17, %cst_16 {dimension_numbers = #tpu.dot_dimension_numbers<[1], [0], [0], [1], [0, 0, 1, 1], [], []>} : vector<16x128xbf16>, vector<128x128xbf16>, vector<16x128xf32> -> vector<16x128xf32>
    %20 = vector.broadcast %18 : vector<1x128xf32> to vector<16x128xf32>
    %21 = arith.addf %19, %20 : vector<16x128xf32>
    %c0_17 = arith.constant 0 : index
    %c0_18 = arith.constant 0 : index
    %22 = vector.load %arg8[%c0_17, %c0_18] : memref<16x128xf32, #tpu.memory_space<vmem>>, vector<16x128xf32>
    tpu.vector_store %arg8[%c0_17, %c0_18], %21 {strides = array<i32>} : memref<16x128xf32, #tpu.memory_space<vmem>>, vector<16x128xf32>,
    return
  }
  func.func @transform_0(%arg0: i32) -> (i32, i32) {
    %c0_i32 = arith.constant 0 : i32
    %c0_i32_0 = arith.constant 0 : i32
    return %arg0, %c0_i32 : i32, i32
  }
  func.func @transform_1(%arg0: i32) -> (i32, i32) {
    %c0_i32 = arith.constant 0 : i32
    %c0_i32_0 = arith.constant 0 : i32
    %c0_i32_1 = arith.constant 0 : i32
    return %c0_i32, %c0_i32_0 : i32, i32
  }
  func.func @transform_2(%arg0: i32) -> (i32, i32) {
    %c0_i32 = arith.constant 0 : i32
    %c0_i32_0 = arith.constant 0 : i32
    %c0_i32_1 = arith.constant 0 : i32
    return %c0_i32, %c0_i32_0 : i32, i32
  }
  func.func @transform_3(%arg0: i32) -> (i32, i32) {
    %c0_i32 = arith.constant 0 : i32
    %c0_i32_0 = arith.constant 0 : i32
    %c0_i32_1 = arith.constant 0 : i32
    return %c0_i32, %c0_i32_0 : i32, i32
  }
  func.func @transform_4(%arg0: i32) -> (i32, i32) {
    %c0_i32 = arith.constant 0 : i32
    %c0_i32_0 = arith.constant 0 : i32
    %c0_i32_1 = arith.constant 0 : i32
    return %c0_i32, %c0_i32_0 : i32, i32
  }
  func.func @transform_5(%arg0: i32) -> (i32, i32) {
    %c0_i32 = arith.constant 0 : i32
    %c0_i32_0 = arith.constant 0 : i32
    %c0_i32_1 = arith.constant 0 : i32
    return %c0_i32, %c0_i32_0 : i32, i32
  }
  func.func @transform_6(%arg0: i32) -> (i32, i32) {
    %c0_i32 = arith.constant 0 : i32
    %c0_i32_0 = arith.constant 0 : i32
    %c0_i32_1 = arith.constant 0 : i32
    return %c0_i32, %c0_i32_0 : i32, i32
  }
  func.func @transform_7(%arg0: i32) -> (i32, i32) {
    %c0_i32 = arith.constant 0 : i32
    %c0_i32_0 = arith.constant 0 : i32
    return %arg0, %c0_i32 : i32, i32
  }
}

</mosaic_0001>

<llo_original>
// kernel: _forward_impl.1
$region0: #{_forward_impl.1}
  #allocation0 [shape = 'u32[]', space=smem, size = 0x4, offset = 0x4, fixed_abs, tag = 'smem constant byte address 0x4 - core index']
  #allocation1 [shape = 'u32[72,128]{1,0:T(1,128)}', space=vmem, size = 0x9000, scoped, tag = 'internal scratch']
  %s0 = inlined_call_operand.vmem [shape: bf16[16,128], index: 0, kind: input, shape index: {}]
  %s1 = inlined_call_operand.vmem [shape: bf16[128,128], index: 1, kind: input, shape index: {}]
  %s2 = inlined_call_operand.vmem [shape: f32[1,128], index: 2, kind: input, shape index: {}]
  %s3 = inlined_call_operand.vmem [shape: bf16[128,128], index: 3, kind: input, shape index: {}]
  %s4 = inlined_call_operand.vmem [shape: f32[1,128], index: 4, kind: input, shape index: {}]
  %s5 = inlined_call_operand.vmem [shape: bf16[128,128], index: 5, kind: input, shape index: {}]
  %s6 = inlined_call_operand.vmem [shape: f32[1,128], index: 6, kind: input, shape index: {}]
  %s7 = inlined_call_operand.vmem [shape: f32[16,128], index: 7, kind: output, shape index: {}]
  %s8 = sld [smem:[#allocation0]]
  $region38: #{_forward_impl.1} parent=0
    _
  %s10 = ssub.s32 1, %s8
  %s11 = scalar_select 0, %s10, %s8
  // Predicated region
  $region2: #{_forward_impl.1} parent=0 // pred_check
    _
  $region3: #{_forward_impl.1} parent=0 // pred_check_branch
    %13 = sbr.rel (0) target = $region5
  $region4: #{_forward_impl.1} parent=0 // pred_region
    _
  $region5: #{_forward_impl.1} parent=0 // pred_fallthru
    _
  // Predicated region
  $region6: #{_forward_impl.1} parent=0 // pred_check
    _
  $region7: #{_forward_impl.1} parent=0 // pred_check_branch
    %15 = sbr.rel (0) target = $region9
  $region8: #{_forward_impl.1} parent=0 // pred_region
    _
  $region9: #{_forward_impl.1} parent=0 // pred_fallthru
    _
  // Predicated region
  $region10: #{_forward_impl.1} parent=0 // pred_check
    _
  $region11: #{_forward_impl.1} parent=0 // pred_check_branch
    %17 = sbr.rel (0) target = $region13
  $region12: #{_forward_impl.1} parent=0 // pred_region
    _
  $region13: #{_forward_impl.1} parent=0 // pred_fallthru
    _
  // Predicated region
  $region14: #{_forward_impl.1} parent=0 // pred_check
    _
  $region15: #{_forward_impl.1} parent=0 // pred_check_branch
    %19 = sbr.rel (0) target = $region17
  $region16: #{_forward_impl.1} parent=0 // pred_region
    _
  $region17: #{_forward_impl.1} parent=0 // pred_fallthru
    _
  // Predicated region
  $region18: #{_forward_impl.1} parent=0 // pred_check
    _
  $region19: #{_forward_impl.1} parent=0 // pred_check_branch
    %21 = sbr.rel (0) target = $region21
  $region20: #{_forward_impl.1} parent=0 // pred_region
    _
  $region21: #{_forward_impl.1} parent=0 // pred_fallthru
    _
  // Predicated region
  $region22: #{_forward_impl.1} parent=0 // pred_check
    _
  $region23: #{_forward_impl.1} parent=0 // pred_check_branch
    %23 = sbr.rel (0) target = $region25
  $region24: #{_forward_impl.1} parent=0 // pred_region
    _
  $region25: #{_forward_impl.1} parent=0 // pred_fallthru
    _
  // Predicated region
  $region26: #{_forward_impl.1} parent=0 // pred_check
    _
  $region27: #{_forward_impl.1} parent=0 // pred_check_branch
    %25 = sbr.rel (0) target = $region29
  $region28: #{_forward_impl.1} parent=0 // pred_region
    _
  $region29: #{_forward_impl.1} parent=0 // pred_fallthru
    _
  %v26 = vld [vmem:[%s0] sm:$0xf]
  %v27 = vld [vmem:[%s0 + $0x4] sm:$0xf]
  %v28 = vld [vmem:[%s1] sm:$0xf]
  %v29 = vld [vmem:[%s1 + $0x4] sm:$0xf]
  %v30 = vld [vmem:[%s1 + $0x8] sm:$0xf]
  %v31 = vld [vmem:[%s1 + $0xc] sm:$0xf]
  %v32 = vld [vmem:[%s1 + $0x10] sm:$0xf]
  %v33 = vld [vmem:[%s1 + $0x14] sm:$0xf]
  %v34 = vld [vmem:[%s1 + $0x18] sm:$0xf]
  %v35 = vld [vmem:[%s1 + $0x1c] sm:$0xf]
  %v36 = vld [vmem:[%s1 + $0x20] sm:$0xf]
  %v37 = vld [vmem:[%s1 + $0x24] sm:$0xf]
  %v38 = vld [vmem:[%s1 + $0x28] sm:$0xf]
  %v39 = vld [vmem:[%s1 + $0x2c] sm:$0xf]
  %v40 = vld [vmem:[%s1 + $0x30] sm:$0xf]
  %v41 = vld [vmem:[%s1 + $0x34] sm:$0xf]
  %v42 = vld [vmem:[%s1 + $0x38] sm:$0xf]
  %v43 = vld [vmem:[%s1 + $0x3c] sm:$0xf]
  %v44 = vld [vmem:[%s2] sm:$0x1]
  %v46 = vperm.slane %v44, 0
  %v50 = vunpack.c.l.b16 %v26
  %v51 = vunpack.c.l.b16 %v27
  %v52 = vpack.c.b16 %v51, %v50
  %v70 = vunpack.c.l.b16 %v28
  %v71 = vunpack.c.l.b16 %v29
  %v72 = vunpack.c.l.b16 %v30
  %v73 = vunpack.c.l.b16 %v31
  %v74 = vunpack.c.l.b16 %v32
  %v75 = vunpack.c.l.b16 %v33
  %v76 = vunpack.c.l.b16 %v34
  %v77 = vunpack.c.l.b16 %v35
  %v78 = vunpack.c.l.b16 %v36
  %v79 = vunpack.c.l.b16 %v37
  %v80 = vunpack.c.l.b16 %v38
  %v81 = vunpack.c.l.b16 %v39
  %v82 = vunpack.c.l.b16 %v40
  %v83 = vunpack.c.l.b16 %v41
  %v84 = vunpack.c.l.b16 %v42
  %v85 = vunpack.c.l.b16 %v43
  %v86 = vpack.c.b16 %v71, %v70
  %v87 = vpack.c.b16 %v73, %v72
  %v88 = vpack.c.b16 %v75, %v74
  %v89 = vpack.c.b16 %v77, %v76
  %v90 = vpack.c.b16 %v79, %v78
  %v91 = vpack.c.b16 %v81, %v80
  %v92 = vpack.c.b16 %v83, %v82
  %v93 = vpack.c.b16 %v85, %v84
  %102 = vmatpush.bf16.msra.mxu0 %v93
  %103 = vmatpush.bf16.msra.mxu0 %v92
  %104 = vmatpush.bf16.msra.mxu0 %v91
  %105 = vmatpush.bf16.msra.mxu0 %v90
  %106 = vmatpush.bf16.msra.mxu0 %v89
  %107 = vmatpush.bf16.msra.mxu0 %v88
  %108 = vmatpush.bf16.msra.mxu0 %v87
  %109 = vmatpush.bf16.msra.mxu0 %v86
  %110 = vmatmul.bf16.gmra.mxu0 %v52
  %v111 = vpop.f32.mrf.mxu0
  %v112 = vadd.f32 %v46, %v111
  %v113 = vpop.f32.mrf.mxu0
  %v114 = vadd.f32 %v46, %v113
  %115 = vdwg.mxu0
  %v116 = vmax.f32 %v112, 0.0
  %v117 = vmax.f32 %v114, 0.0
  %v118 = vpack.c.bf16 %v117, %v116
  %v119 = vld [vmem:[%s3] sm:$0xf]
  %v120 = vld [vmem:[%s3 + $0x4] sm:$0xf]
  %v121 = vld [vmem:[%s3 + $0x8] sm:$0xf]
  %v122 = vld [vmem:[%s3 + $0xc] sm:$0xf]
  %v123 = vld [vmem:[%s3 + $0x10] sm:$0xf]
  %v124 = vld [vmem:[%s3 + $0x14] sm:$0xf]
  %v125 = vld [vmem:[%s3 + $0x18] sm:$0xf]
  %v126 = vld [vmem:[%s3 + $0x1c] sm:$0xf]
  %v127 = vld [vmem:[%s3 + $0x20] sm:$0xf]
  %v128 = vld [vmem:[%s3 + $0x24] sm:$0xf]
  %v129 = vld [vmem:[%s3 + $0x28] sm:$0xf]
  %v130 = vld [vmem:[%s3 + $0x2c] sm:$0xf]
  %v131 = vld [vmem:[%s3 + $0x30] sm:$0xf]
  %v132 = vld [vmem:[%s3 + $0x34] sm:$0xf]
  %v133 = vld [vmem:[%s3 + $0x38] sm:$0xf]
  %v134 = vld [vmem:[%s3 + $0x3c] sm:$0xf]
  %v135 = vld [vmem:[%s4] sm:$0x1]
  %v137 = vperm.slane %v135, 0
  %v155 = vunpack.c.l.b16 %v119
  %v156 = vunpack.c.l.b16 %v120
  %v157 = vunpack.c.l.b16 %v121
  %v158 = vunpack.c.l.b16 %v122
  %v159 = vunpack.c.l.b16 %v123
  %v160 = vunpack.c.l.b16 %v124
  %v161 = vunpack.c.l.b16 %v125
  %v162 = vunpack.c.l.b16 %v126
  %v163 = vunpack.c.l.b16 %v127
  %v164 = vunpack.c.l.b16 %v128
  %v165 = vunpack.c.l.b16 %v129
  %v166 = vunpack.c.l.b16 %v130
  %v167 = vunpack.c.l.b16 %v131
  %v168 = vunpack.c.l.b16 %v132
  %v169 = vunpack.c.l.b16 %v133
  %v170 = vunpack.c.l.b16 %v134
  %v171 = vpack.c.b16 %v156, %v155
  %v172 = vpack.c.b16 %v158, %v157
  %v173 = vpack.c.b16 %v160, %v159
  %v174 = vpack.c.b16 %v162, %v161
  %v175 = vpack.c.b16 %v164, %v163
  %v176 = vpack.c.b16 %v166, %v165
  %v177 = vpack.c.b16 %v168, %v167
  %v178 = vpack.c.b16 %v170, %v169
  %187 = vmatpush.bf16.msra.mxu0 %v178
  %188 = vmatpush.bf16.msra.mxu0 %v177
  %189 = vmatpush.bf16.msra.mxu0 %v176
  %190 = vmatpush.bf16.msra.mxu0 %v175
  %191 = vmatpush.bf16.msra.mxu0 %v174
  %192 = vmatpush.bf16.msra.mxu0 %v173
  %193 = vmatpush.bf16.msra.mxu0 %v172
  %194 = vmatpush.bf16.msra.mxu0 %v171
  %195 = vmatmul.bf16.gmra.mxu0 %v118
  %v196 = vpop.f32.mrf.mxu0
  %v197 = vadd.f32 %v137, %v196
  %v198 = vpop.f32.mrf.mxu0
  %v199 = vadd.f32 %v137, %v198
  %200 = vdwg.mxu0
  %v201 = vmax.f32 %v197, 0.0
  %v202 = vmax.f32 %v199, 0.0
  %v203 = vpack.c.bf16 %v202, %v201
  %v204 = vld [vmem:[%s5] sm:$0xf]
  %v205 = vld [vmem:[%s5 + $0x4] sm:$0xf]
  %v206 = vld [vmem:[%s5 + $0x8] sm:$0xf]
  %v207 = vld [vmem:[%s5 + $0xc] sm:$0xf]
  %v208 = vld [vmem:[%s5 + $0x10] sm:$0xf]
  %v209 = vld [vmem:[%s5 + $0x14] sm:$0xf]
  %v210 = vld [vmem:[%s5 + $0x18] sm:$0xf]
  %v211 = vld [vmem:[%s5 + $0x1c] sm:$0xf]
  %v212 = vld [vmem:[%s5 + $0x20] sm:$0xf]
  %v213 = vld [vmem:[%s5 + $0x24] sm:$0xf]
  %v214 = vld [vmem:[%s5 + $0x28] sm:$0xf]
  %v215 = vld [vmem:[%s5 + $0x2c] sm:$0xf]
  %v216 = vld [vmem:[%s5 + $0x30] sm:$0xf]
  %v217 = vld [vmem:[%s5 + $0x34] sm:$0xf]
  %v218 = vld [vmem:[%s5 + $0x38] sm:$0xf]
  %v219 = vld [vmem:[%s5 + $0x3c] sm:$0xf]
  %v220 = vld [vmem:[%s6] sm:$0x1]
  %v222 = vperm.slane %v220, 0
  %v240 = vunpack.c.l.b16 %v204
  %v241 = vunpack.c.l.b16 %v205
  %v242 = vunpack.c.l.b16 %v206
  %v243 = vunpack.c.l.b16 %v207
  %v244 = vunpack.c.l.b16 %v208
  %v245 = vunpack.c.l.b16 %v209
  %v246 = vunpack.c.l.b16 %v210
  %v247 = vunpack.c.l.b16 %v211
  %v248 = vunpack.c.l.b16 %v212
  %v249 = vunpack.c.l.b16 %v213
  %v250 = vunpack.c.l.b16 %v214
  %v251 = vunpack.c.l.b16 %v215
  %v252 = vunpack.c.l.b16 %v216
  %v253 = vunpack.c.l.b16 %v217
  %v254 = vunpack.c.l.b16 %v218
  %v255 = vunpack.c.l.b16 %v219
  %v256 = vpack.c.b16 %v241, %v240
  %v257 = vpack.c.b16 %v243, %v242
  %v258 = vpack.c.b16 %v245, %v244
  %v259 = vpack.c.b16 %v247, %v246
  %v260 = vpack.c.b16 %v249, %v248
  %v261 = vpack.c.b16 %v251, %v250
  %v262 = vpack.c.b16 %v253, %v252
  %v263 = vpack.c.b16 %v255, %v254
  %272 = vmatpush.bf16.msra.mxu0 %v263
  %273 = vmatpush.bf16.msra.mxu0 %v262
  %274 = vmatpush.bf16.msra.mxu0 %v261
  %275 = vmatpush.bf16.msra.mxu0 %v260
  %276 = vmatpush.bf16.msra.mxu0 %v259
  %277 = vmatpush.bf16.msra.mxu0 %v258
  %278 = vmatpush.bf16.msra.mxu0 %v257
  %279 = vmatpush.bf16.msra.mxu0 %v256
  %280 = vmatmul.bf16.gmra.mxu0 %v203
  %v281 = vpop.f32.mrf.mxu0
  %v282 = vadd.f32 %v222, %v281
  %v283 = vpop.f32.mrf.mxu0
  %v284 = vadd.f32 %v222, %v283
  %285 = vdwg.mxu0
  %286 = vst [vmem:[%s7] sm:$0xff] %v282
  %287 = vst [vmem:[%s7 + $0x8] sm:$0xff] %v284
  // Predicated region
  $region30: #{_forward_impl.1} parent=0 // pred_check
    _
  $region31: #{_forward_impl.1} parent=0 // pred_check_branch
    %289 = sbr.rel (0) target = $region33
  $region32: #{_forward_impl.1} parent=0 // pred_region
    _
  $region33: #{_forward_impl.1} parent=0 // pred_fallthru
    _
  // Predicated region
  $region34: #{_forward_impl.1} parent=0 // pred_check
    _
  $region35: #{_forward_impl.1} parent=0 // pred_check_branch
    %291 = sbr.rel (0) target = $region37
  $region36: #{_forward_impl.1} parent=0 // pred_region
    _
  $region37: #{_forward_impl.1} parent=0 // pred_fallthru
    _

</llo_original>
